<compile_context>
chip_gen: v7x
topology: tpu7x:2x2x1
jax: 0.10.0
libtpu: 0.0.40
codegen_flags: <defaults>
</compile_context>

<pallas_src>
import math

import jax
import jax.numpy as jnp
from jax.experimental import pallas as pl
from jax.experimental.pallas import tpu as pltpu


def _offset_scale_kernel(x_ref, gamma_ref, beta_ref, *out_refs):
    # x_ref:      (TM, Dp)   current row-tile of the lane-packed input
    # gamma_ref:  (H,  Dp)   resident scale rows (constant index_map)
    # beta_ref:   (H,  Dp)   resident offset rows (constant index_map)
    # out_refs:   H refs of (TM, Dp) — one per head, written lane-dense
    x = x_ref[...].astype(jnp.float32)
    for h, o_ref in enumerate(out_refs):  # H is small & static -> unrolled
        g = gamma_ref[h].astype(jnp.float32)
        b = beta_ref[h].astype(jnp.float32)
        o_ref[...] = (x * g + b).astype(o_ref.dtype)


def _round_up(a, b):
    return ((a + b - 1) // b) * b


def _tpu_vmem_capacity():
    """Physical VMEM bytes (generation-aware), with a conservative fallback."""
    try:
        cap = int(pltpu.get_tpu_info().vmem_capacity_bytes)
        if cap > 0:
            return cap
    except Exception:
        pass
    return 64 << 20  # v7x per-TC size: safe lower bound for all generations


def _choose_row_tile(Mp, Dp, H, dtype_bytes, sublane_pack, budget):
    """Largest sublane-aligned row tile whose pipelined buffers fit `budget`."""
    # Double-buffered x tile + H double-buffered out tiles
    # + f32 intermediates inside the body (x upcast + one per-head f32 result).
    per_row = 2 * (1 + H) * Dp * dtype_bytes + 2 * Dp * 4
    # gamma/beta are double-buffered by the pipeline despite the constant map.
    fixed = 4 * H * Dp * dtype_bytes
    avail = max(budget - fixed, per_row * sublane_pack)
    tile = int(avail // per_row)
    tile = max(sublane_pack, min(tile, 1024))
    return (tile // sublane_pack) * sublane_pack
    # NOTE: for very large H*Dp a second (lane) grid axis would keep even the
    # minimum row tile within budget; not needed at these head counts.


def offset_scale(x, gamma, beta, *, row_tile=None):
    """Pallas OffsetScale.

    x:     (..., D)
    gamma: (H, D)
    beta:  (H, D)
    returns: tuple of H arrays, each of shape x.shape
    """
    *lead, D = x.shape
    H, Dg = gamma.shape
    assert Dg == D and beta.shape == (H, D)

    M = math.prod(lead) if lead else 1
    dtype = x.dtype
    dtype_bytes = jnp.dtype(dtype).itemsize
    sublane_pack = 8 * max(1, 4 // dtype_bytes)  # 8 f32, 16 bf16, 32 int8/fp8

    # --- lane packing: make the lane dim a multiple of 128 (full-width vst) ---
    k = 1 if D % 128 == 0 else 128 // math.gcd(D, 128)
    Dp = k * D
    Mp = -(-M // k)  # packed rows (ceil; padded below)

    # --- VMEM sizing (generation-aware) ---
    cap = _tpu_vmem_capacity()
    vmem_limit = max(min(cap - (8 << 20), 96 << 20), 32 << 20)
    tile_budget = vmem_limit // 2  # headroom for compiler scratch / pipeline

    if row_tile is None:
        row_tile = _choose_row_tile(Mp, Dp, H, dtype_bytes, sublane_pack, tile_budget)
        # Megacore (v7x): keep >= 2 (ideally >= 4) grid steps when enough rows.
        if Mp >= 2 * sublane_pack:
            steps = 4 if Mp >= 4 * sublane_pack else 2
            cap_tile = _round_up(-(-Mp // steps), sublane_pack)
            row_tile = min(row_tile, max(sublane_pack, cap_tile))
    else:
        row_tile = max(sublane_pack, _round_up(int(row_tile), sublane_pack))
    # Never pad beyond one tile of slack.
    row_tile = min(row_tile, _round_up(Mp, sublane_pack))

    Mp_pad = _round_up(Mp, row_tile)
    M_pad = Mp_pad * k

    x_flat = x.reshape(M, D)
    if M_pad > M:
        x_flat = jnp.pad(x_flat, ((0, M_pad - M), (0, 0)))
    x2 = x_flat.reshape(Mp_pad, Dp)
    gamma_p = jnp.tile(gamma, (1, k)) if k > 1 else gamma  # (H, Dp)
    beta_p = jnp.tile(beta, (1, k)) if k > 1 else beta     # (H, Dp)

    grid = (Mp_pad // row_tile,)

    cost = pl.CostEstimate(
        flops=2 * H * Mp_pad * Dp,
        transcendentals=0,
        bytes_accessed=(Mp_pad * Dp + 2 * H * Dp + H * Mp_pad * Dp) * dtype_bytes,
    )

    outs = pl.pallas_call(
        _offset_scale_kernel,
        out_shape=tuple(
            jax.ShapeDtypeStruct((Mp_pad, Dp), dtype) for _ in range(H)
        ),
        grid_spec=pltpu.PrefetchScalarGridSpec(
            num_scalar_prefetch=0,
            grid=grid,
            in_specs=[
                pl.BlockSpec((row_tile, Dp), lambda i: (i, 0)),  # x row-tile
                pl.BlockSpec((H, Dp), lambda i: (0, 0)),         # gamma (resident)
                pl.BlockSpec((H, Dp), lambda i: (0, 0)),         # beta  (resident)
            ],
            out_specs=tuple(
                pl.BlockSpec((row_tile, Dp), lambda i: (i, 0)) for _ in range(H)
            ),
        ),
        compiler_params=pltpu.CompilerParams(
            dimension_semantics=("parallel",),  # shards grid across TCs on v7x
            vmem_limit_bytes=int(vmem_limit),
        ),
        cost_estimate=cost,
    )(x2, gamma_p, beta_p)

    def _unpack(o):
        o = o.reshape(M_pad, D)
        if M_pad > M:
            o = o[:M]
        return o.reshape(*lead, D)

    return tuple(_unpack(o) for o in outs)


def offset_scale_reference(x, gamma, beta):
    # out[..., h, d] = x[..., d] * gamma[h, d] + beta[h, d]
    out = x[..., None, :] * gamma + beta
    return tuple(out[..., h, :] for h in range(gamma.shape[0]))


if __name__ == "__main__":
    key = jax.random.PRNGKey(0)
    k_x, k_g = jax.random.split(key)

    B, N, D, H = 2, 8, 32, 4

    x = jax.random.normal(k_x, (B, N, D), dtype=jnp.float32)
    # nn.init.normal_(gamma, std=0.02); beta initialized to zeros
    gamma = 0.02 * jax.random.normal(k_g, (H, D), dtype=jnp.float32)
    beta = jnp.zeros((H, D), dtype=jnp.float32)

    outs = offset_scale(x, gamma, beta)
    outs = jax.block_until_ready(outs)

    refs = offset_scale_reference(x, gamma, beta)
    assert len(outs) == H
    for o, r in zip(outs, refs):
        assert o.shape == (B, N, D)
        assert o.dtype == jnp.float32
        assert jnp.allclose(o, r, atol=1e-6, rtol=1e-6)

    print("KERNEL_OK")
</pallas_src>

<mosaic_0001>
module attributes {stable_mosaic.version = 11 : i64} {
  func.func @_offset_scale_kernel(%arg0: i32, %arg1: memref<8x128xf32, #tpu.memory_space<vmem>>, %arg2: memref<4x128xf32, #tpu.memory_space<vmem>>, %arg3: memref<4x128xf32, #tpu.memory_space<vmem>>, %arg4: memref<8x128xf32, #tpu.memory_space<vmem>>, %arg5: memref<8x128xf32, #tpu.memory_space<vmem>>, %arg6: memref<8x128xf32, #tpu.memory_space<vmem>>, %arg7: memref<8x128xf32, #tpu.memory_space<vmem>>) attributes {dimension_semantics = [#tpu.dimension_semantics<parallel>], iteration_bounds = array<i64: 1>, scalar_prefetch = 0 : i64, scratch_operands = 0 : i64, tpu.core_type = #tpu.core_type<tc>, window_params = [{transform_indices = @transform_0, window_bounds = array<i64: 8, 128>}, {pipeline_mode = #tpu.pipeline_mode<synchronous>, transform_indices = @transform_1, window_bounds = array<i64: 4, 128>}, {pipeline_mode = #tpu.pipeline_mode<synchronous>, transform_indices = @transform_2, window_bounds = array<i64: 4, 128>}, {transform_indices = @transform_3, window_bounds = array<i64: 8, 128>}, {transform_indices = @transform_4, window_bounds = array<i64: 8, 128>}, {transform_indices = @transform_5, window_bounds = array<i64: 8, 128>}, {transform_indices = @transform_6, window_bounds = array<i64: 8, 128>}]} {
    %c0 = arith.constant 0 : index
    %c0_0 = arith.constant 0 : index
    %0 = vector.load %arg1[%c0, %c0_0] : memref<8x128xf32, #tpu.memory_space<vmem>>, vector<8x128xf32>
    %c0_1 = arith.constant 0 : index
    %c0_2 = arith.constant 0 : index
    %1 = vector.load %arg2[%c0_1, %c0_2] : memref<4x128xf32, #tpu.memory_space<vmem>>, vector<1x128xf32>
    %2 = vector.shape_cast %1 : vector<1x128xf32> to vector<128xf32>
    %c0_3 = arith.constant 0 : index
    %c0_4 = arith.constant 0 : index
    %3 = vector.load %arg3[%c0_3, %c0_4] : memref<4x128xf32, #tpu.memory_space<vmem>>, vector<1x128xf32>
    %4 = vector.shape_cast %3 : vector<1x128xf32> to vector<128xf32>
    %5 = vector.shape_cast %2 : vector<128xf32> to vector<1x128xf32>
    %6 = vector.broadcast %5 : vector<1x128xf32> to vector<8x128xf32>
    %7 = arith.mulf %0, %6 : vector<8x128xf32>
    %8 = vector.shape_cast %4 : vector<128xf32> to vector<1x128xf32>
    %9 = vector.broadcast %8 : vector<1x128xf32> to vector<8x128xf32>
    %10 = arith.addf %7, %9 : vector<8x128xf32>
    %c0_5 = arith.constant 0 : index
    %c0_6 = arith.constant 0 : index
    %11 = vector.load %arg4[%c0_5, %c0_6] : memref<8x128xf32, #tpu.memory_space<vmem>>, vector<8x128xf32>
    tpu.vector_store %arg4[%c0_5, %c0_6], %10 {strides = array<i32>} : memref<8x128xf32, #tpu.memory_space<vmem>>, vector<8x128xf32>,
    %c1 = arith.constant 1 : index
    %c0_7 = arith.constant 0 : index
    %12 = vector.load %arg2[%c1, %c0_7] : memref<4x128xf32, #tpu.memory_space<vmem>>, vector<1x128xf32>
    %13 = vector.shape_cast %12 : vector<1x128xf32> to vector<128xf32>
    %c1_8 = arith.constant 1 : index
    %c0_9 = arith.constant 0 : index
    %14 = vector.load %arg3[%c1_8, %c0_9] : memref<4x128xf32, #tpu.memory_space<vmem>>, vector<1x128xf32>
    %15 = vector.shape_cast %14 : vector<1x128xf32> to vector<128xf32>
    %16 = vector.shape_cast %13 : vector<128xf32> to vector<1x128xf32>
    %17 = vector.broadcast %16 : vector<1x128xf32> to vector<8x128xf32>
    %18 = arith.mulf %0, %17 : vector<8x128xf32>
    %19 = vector.shape_cast %15 : vector<128xf32> to vector<1x128xf32>
    %20 = vector.broadcast %19 : vector<1x128xf32> to vector<8x128xf32>
    %21 = arith.addf %18, %20 : vector<8x128xf32>
    %c0_10 = arith.constant 0 : index
    %c0_11 = arith.constant 0 : index
    %22 = vector.load %arg5[%c0_10, %c0_11] : memref<8x128xf32, #tpu.memory_space<vmem>>, vector<8x128xf32>
    tpu.vector_store %arg5[%c0_10, %c0_11], %21 {strides = array<i32>} : memref<8x128xf32, #tpu.memory_space<vmem>>, vector<8x128xf32>,
    %c2 = arith.constant 2 : index
    %c0_12 = arith.constant 0 : index
    %23 = vector.load %arg2[%c2, %c0_12] : memref<4x128xf32, #tpu.memory_space<vmem>>, vector<1x128xf32>
    %24 = vector.shape_cast %23 : vector<1x128xf32> to vector<128xf32>
    %c2_13 = arith.constant 2 : index
    %c0_14 = arith.constant 0 : index
    %25 = vector.load %arg3[%c2_13, %c0_14] : memref<4x128xf32, #tpu.memory_space<vmem>>, vector<1x128xf32>
    %26 = vector.shape_cast %25 : vector<1x128xf32> to vector<128xf32>
    %27 = vector.shape_cast %24 : vector<128xf32> to vector<1x128xf32>
    %28 = vector.broadcast %27 : vector<1x128xf32> to vector<8x128xf32>
    %29 = arith.mulf %0, %28 : vector<8x128xf32>
    %30 = vector.shape_cast %26 : vector<128xf32> to vector<1x128xf32>
    %31 = vector.broadcast %30 : vector<1x128xf32> to vector<8x128xf32>
    %32 = arith.addf %29, %31 : vector<8x128xf32>
    %c0_15 = arith.constant 0 : index
    %c0_16 = arith.constant 0 : index
    %33 = vector.load %arg6[%c0_15, %c0_16] : memref<8x128xf32, #tpu.memory_space<vmem>>, vector<8x128xf32>
    tpu.vector_store %arg6[%c0_15, %c0_16], %32 {strides = array<i32>} : memref<8x128xf32, #tpu.memory_space<vmem>>, vector<8x128xf32>,
    %c3 = arith.constant 3 : index
    %c0_17 = arith.constant 0 : index
    %34 = vector.load %arg2[%c3, %c0_17] : memref<4x128xf32, #tpu.memory_space<vmem>>, vector<1x128xf32>
    %35 = vector.shape_cast %34 : vector<1x128xf32> to vector<128xf32>
    %c3_18 = arith.constant 3 : index
    %c0_19 = arith.constant 0 : index
    %36 = vector.load %arg3[%c3_18, %c0_19] : memref<4x128xf32, #tpu.memory_space<vmem>>, vector<1x128xf32>
    %37 = vector.shape_cast %36 : vector<1x128xf32> to vector<128xf32>
    %38 = vector.shape_cast %35 : vector<128xf32> to vector<1x128xf32>
    %39 = vector.broadcast %38 : vector<1x128xf32> to vector<8x128xf32>
    %40 = arith.mulf %0, %39 : vector<8x128xf32>
    %41 = vector.shape_cast %37 : vector<128xf32> to vector<1x128xf32>
    %42 = vector.broadcast %41 : vector<1x128xf32> to vector<8x128xf32>
    %43 = arith.addf %40, %42 : vector<8x128xf32>
    %c0_20 = arith.constant 0 : index
    %c0_21 = arith.constant 0 : index
    %44 = vector.load %arg7[%c0_20, %c0_21] : memref<8x128xf32, #tpu.memory_space<vmem>>, vector<8x128xf32>
    tpu.vector_store %arg7[%c0_20, %c0_21], %43 {strides = array<i32>} : memref<8x128xf32, #tpu.memory_space<vmem>>, vector<8x128xf32>,
    return
  }
  func.func @transform_0(%arg0: i32) -> (i32, i32) {
    %c0_i32 = arith.constant 0 : i32
    %c0_i32_0 = arith.constant 0 : i32
    return %arg0, %c0_i32 : i32, i32
  }
  func.func @transform_1(%arg0: i32) -> (i32, i32) {
    %c0_i32 = arith.constant 0 : i32
    %c0_i32_0 = arith.constant 0 : i32
    %c0_i32_1 = arith.constant 0 : i32
    return %c0_i32, %c0_i32_0 : i32, i32
  }
  func.func @transform_2(%arg0: i32) -> (i32, i32) {
    %c0_i32 = arith.constant 0 : i32
    %c0_i32_0 = arith.constant 0 : i32
    %c0_i32_1 = arith.constant 0 : i32
    return %c0_i32, %c0_i32_0 : i32, i32
  }
  func.func @transform_3(%arg0: i32) -> (i32, i32) {
    %c0_i32 = arith.constant 0 : i32
    %c0_i32_0 = arith.constant 0 : i32
    return %arg0, %c0_i32 : i32, i32
  }
  func.func @transform_4(%arg0: i32) -> (i32, i32) {
    %c0_i32 = arith.constant 0 : i32
    %c0_i32_0 = arith.constant 0 : i32
    return %arg0, %c0_i32 : i32, i32
  }
  func.func @transform_5(%arg0: i32) -> (i32, i32) {
    %c0_i32 = arith.constant 0 : i32
    %c0_i32_0 = arith.constant 0 : i32
    return %arg0, %c0_i32 : i32, i32
  }
  func.func @transform_6(%arg0: i32) -> (i32, i32) {
    %c0_i32 = arith.constant 0 : i32
    %c0_i32_0 = arith.constant 0 : i32
    return %arg0, %c0_i32 : i32, i32
  }
}

</mosaic_0001>

<llo_original>
// kernel: tpu_custom_call.1
$region0: #{tpu_custom_call.1}
  #allocation0 [shape = 'u32[]', space=smem, size = 0x4, offset = 0x4, fixed_abs, tag = 'smem constant byte address 0x4 - core index']
  #allocation1 [shape = 'u32[144,128]{1,0:T(1,128)}', space=vmem, size = 0x12000, scoped, tag = 'internal scratch']
  %s0 = inlined_call_operand.hbm [shape: f32[8,128], index: 0, kind: input, shape index: {}]
  %s1 = inlined_call_operand.hbm [shape: f32[4,128], index: 1, kind: input, shape index: {}]
  %s2 = inlined_call_operand.vmem [shape: f32[4,128], index: 2, kind: input, shape index: {}]
  %s3 = inlined_call_operand.hbm [shape: f32[8,128], index: 3, kind: output, shape index: {0}]
  %s4 = inlined_call_operand.hbm [shape: f32[8,128], index: 4, kind: output, shape index: {1}]
  %s5 = inlined_call_operand.hbm [shape: f32[8,128], index: 5, kind: output, shape index: {2}]
  %s6 = inlined_call_operand.hbm [shape: f32[8,128], index: 6, kind: output, shape index: {3}]
  %7 = xla_tuple %s3, %s4, %s5, %s6
  %s8 = sld [smem:[#allocation0]]
  $region54: #{tpu_custom_call.1} parent=0
    _
  %s10 = ssub.s32 1, %s8
  %s11 = scalar_select 0, %s10, %s8
  $region1: #{tpu_custom_call.1} parent=0
    #allocation2 [shape = 'u8[4096]{0}', space=vmem, size = 0x1000, scoped, tag = 'input window, operand 0, single buffered']
    #allocation3 [shape = 's32[1]{0}', space=sflag, size = 0x4, scoped, tag = 'scoped memory for tpu_custom_call.1']
    #allocation4 [shape = 's32[1]{0}', space=sflag, size = 0x4, scoped, tag = 'scoped memory for tpu_custom_call.1']
    #allocation5 [shape = 'u8[2048]{0}', space=vmem, size = 0x800, scoped, tag = 'input window, operand 1, single buffered']
    #allocation6 [shape = 's32[1]{0}', space=sflag, size = 0x4, scoped, tag = 'scoped memory for tpu_custom_call.1']
    #allocation7 [shape = 'u8[4096]{0}', space=vmem, size = 0x1000, scoped, tag = 'output window, operand 0, single buffered']
    #allocation8 [shape = 'u8[4096]{0}', space=vmem, size = 0x1000, scoped, tag = 'output window, operand 1, single buffered']
    #allocation9 [shape = 's32[1]{0}', space=sflag, size = 0x4, scoped, tag = 'scoped memory for tpu_custom_call.1']
    #allocation10 [shape = 'u8[4096]{0}', space=vmem, size = 0x1000, scoped, tag = 'output window, operand 2, single buffered']
    #allocation11 [shape = 'u8[4096]{0}', space=vmem, size = 0x1000, scoped, tag = 'output window, operand 3, single buffered']
    #allocation12 [shape = 's32[1]{0}', space=sflag, size = 0x4, scoped, tag = 'scoped memory for tpu_custom_call.1']
    %12 = vsyncpa [#allocation3], 0
    %13 = vsyncpa [#allocation6], 0
    %14 = vsyncpa [#allocation4], 0
    %15 = vsyncpa [#allocation9], 0
    %16 = vsyncpa [#allocation12], 0
    // Predicated region
    $region2: #{tpu_custom_call.1} parent=1 // pred_check
      _
    $region3: #{tpu_custom_call.1} parent=1 // pred_check_branch
      %18 = sbr.rel (0) target = $region5
    $region4: #{tpu_custom_call.1} parent=1 // pred_region
      %s20 = ssub.s32 128, 128
      %21 = vsyncadd [#allocation3], %s20
      %s23 = sshll.u32 [#allocation2], 4
      %s24 = int_to_ptr.vmem [resolvable:$true] %s23
      %26 = dma.hbm_to_vmem [thread:$0]  %s0, 128, %s24, [#allocation3]
    $region5: #{tpu_custom_call.1} parent=1 // pred_fallthru
      _
    // Predicated region
    $region6: #{tpu_custom_call.1} parent=1 // pred_check
      _
    $region7: #{tpu_custom_call.1} parent=1 // pred_check_branch
      %28 = sbr.rel (0) target = $region9
    $region8: #{tpu_custom_call.1} parent=1 // pred_region
      %s30 = ssub.s32 64, 64
      %31 = vsyncadd [#allocation6], %s30
      %s33 = sshll.u32 [#allocation5], 4
      %s34 = int_to_ptr.vmem [resolvable:$true] %s33
      %36 = dma.hbm_to_vmem [thread:$0]  %s1, 64, %s34, [#allocation6]
    $region9: #{tpu_custom_call.1} parent=1 // pred_fallthru
      _
    // Predicated region
    $region10: #{tpu_custom_call.1} parent=1 // pred_check
      _
    $region11: #{tpu_custom_call.1} parent=1 // pred_check_branch
      %38 = sbr.rel (0) target = $region13
    $region12: #{tpu_custom_call.1} parent=1 // pred_region
      _
    $region13: #{tpu_custom_call.1} parent=1 // pred_fallthru
      _
    // Predicated region
    $region14: #{tpu_custom_call.1} parent=1 // pred_check
      _
    $region15: #{tpu_custom_call.1} parent=1 // pred_check_branch
      %40 = sbr.rel (0) target = $region17
    $region16: #{tpu_custom_call.1} parent=1 // pred_region
      %41 = dma.done [#allocation3], 128
    $region17: #{tpu_custom_call.1} parent=1 // pred_fallthru
      _
    // Predicated region
    $region18: #{tpu_custom_call.1} parent=1 // pred_check
      _
    $region19: #{tpu_custom_call.1} parent=1 // pred_check_branch
      %43 = sbr.rel (0) target = $region21
    $region20: #{tpu_custom_call.1} parent=1 // pred_region
      %44 = dma.done [#allocation6], 64
    $region21: #{tpu_custom_call.1} parent=1 // pred_fallthru
      _
    %v45 = vld [vmem:[#allocation2] sm:$0xff]
    %v46 = vld [vmem:[#allocation5] sm:$0x1]
    %v47 = vld [vmem:[%s2] sm:$0x1]
    %v48 = vlaneseq
    %v49 = vshrl.u32 %v48, 7
    %v50 = vsub.s32 0, %v49
    %v51 = vrot.slane %v46, %v50
    %v52 = vmul.f32 %v45, %v51
    %v53 = vlaneseq
    %v54 = vshrl.u32 %v53, 7
    %v55 = vsub.s32 0, %v54
    %v56 = vrot.slane %v47, %v55
    %v57 = vadd.f32 %v52, %v56
    %58 = vst [vmem:[#allocation7] sm:$0xff] %v57
    %v59 = vld [vmem:[#allocation5 + $0x1] sm:$0x1]
    %v60 = vld [vmem:[%s2 + $0x1] sm:$0x1]
    %v61 = vlaneseq
    %v62 = vshrl.u32 %v61, 7
    %v63 = vsub.s32 0, %v62
    %v64 = vrot.slane %v59, %v63
    %v65 = vmul.f32 %v45, %v64
    %v66 = vlaneseq
    %v67 = vshrl.u32 %v66, 7
    %v68 = vsub.s32 0, %v67
    %v69 = vrot.slane %v60, %v68
    %v70 = vadd.f32 %v65, %v69
    %71 = vst [vmem:[#allocation8] sm:$0xff] %v70
    %v72 = vld [vmem:[#allocation5 + $0x2] sm:$0x1]
    %v73 = vld [vmem:[%s2 + $0x2] sm:$0x1]
    %v74 = vlaneseq
    %v75 = vshrl.u32 %v74, 7
    %v76 = vsub.s32 0, %v75
    %v77 = vrot.slane %v72, %v76
    %v78 = vmul.f32 %v45, %v77
    %v79 = vlaneseq
    %v80 = vshrl.u32 %v79, 7
    %v81 = vsub.s32 0, %v80
    %v82 = vrot.slane %v73, %v81
    %v83 = vadd.f32 %v78, %v82
    %84 = vst [vmem:[#allocation10] sm:$0xff] %v83
    %v85 = vld [vmem:[#allocation5 + $0x3] sm:$0x1]
    %v86 = vld [vmem:[%s2 + $0x3] sm:$0x1]
    %v87 = vlaneseq
    %v88 = vshrl.u32 %v87, 7
    %v89 = vsub.s32 0, %v88
    %v90 = vrot.slane %v85, %v89
    %v91 = vmul.f32 %v45, %v90
    %v92 = vlaneseq
    %v93 = vshrl.u32 %v92, 7
    %v94 = vsub.s32 0, %v93
    %v95 = vrot.slane %v86, %v94
    %v96 = vadd.f32 %v91, %v95
    %97 = vst [vmem:[#allocation11] sm:$0xff] %v96
    // Predicated region
    $region22: #{tpu_custom_call.1} parent=1 // pred_check
      _
    $region23: #{tpu_custom_call.1} parent=1 // pred_check_branch
      %99 = sbr.rel (0) target = $region25
    $region24: #{tpu_custom_call.1} parent=1 // pred_region
      %s101 = ssub.s32 128, 128
      %102 = vsyncadd [#allocation4], %s101
      %s104 = sshll.u32 [#allocation7], 4
      %s105 = int_to_ptr.vmem [resolvable:$true] %s104
      %107 = dma.vmem_to_hbm [thread:$0]  %s105, 128, %s3, [#allocation4]
    $region25: #{tpu_custom_call.1} parent=1 // pred_fallthru
      _
    // Predicated region
    $region26: #{tpu_custom_call.1} parent=1 // pred_check
      _
    $region27: #{tpu_custom_call.1} parent=1 // pred_check_branch
      %109 = sbr.rel (0) target = $region29
    $region28: #{tpu_custom_call.1} parent=1 // pred_region
      %s111 = ssub.s32 128, 128
      %112 = vsyncadd [#allocation9], %s111
      %s114 = sshll.u32 [#allocation8], 4
      %s115 = int_to_ptr.vmem [resolvable:$true] %s114
      %117 = dma.vmem_to_hbm [thread:$0]  %s115, 128, %s4, [#allocation9]
    $region29: #{tpu_custom_call.1} parent=1 // pred_fallthru
      _
    // Predicated region
    $region30: #{tpu_custom_call.1} parent=1 // pred_check
      _
    $region31: #{tpu_custom_call.1} parent=1 // pred_check_branch
      %119 = sbr.rel (0) target = $region33
    $region32: #{tpu_custom_call.1} parent=1 // pred_region
      %s121 = ssub.s32 128, 128
      %122 = vsyncadd [#allocation9], %s121
      %s124 = sshll.u32 [#allocation10], 4
      %s125 = int_to_ptr.vmem [resolvable:$true] %s124
      %127 = dma.vmem_to_hbm [thread:$0]  %s125, 128, %s5, [#allocation9]
    $region33: #{tpu_custom_call.1} parent=1 // pred_fallthru
      _
    // Predicated region
    $region34: #{tpu_custom_call.1} parent=1 // pred_check
      _
    $region35: #{tpu_custom_call.1} parent=1 // pred_check_branch
      %129 = sbr.rel (0) target = $region37
    $region36: #{tpu_custom_call.1} parent=1 // pred_region
      %s131 = ssub.s32 128, 128
      %132 = vsyncadd [#allocation12], %s131
      %s134 = sshll.u32 [#allocation11], 4
      %s135 = int_to_ptr.vmem [resolvable:$true] %s134
      %137 = dma.vmem_to_hbm [thread:$0]  %s135, 128, %s6, [#allocation12]
    $region37: #{tpu_custom_call.1} parent=1 // pred_fallthru
      _
    // Predicated region
    $region38: #{tpu_custom_call.1} parent=1 // pred_check
      _
    $region39: #{tpu_custom_call.1} parent=1 // pred_check_branch
      %139 = sbr.rel (0) target = $region41
    $region40: #{tpu_custom_call.1} parent=1 // pred_region
      %140 = dma.done [#allocation4], 128
    $region41: #{tpu_custom_call.1} parent=1 // pred_fallthru
      _
    // Predicated region
    $region42: #{tpu_custom_call.1} parent=1 // pred_check
      _
    $region43: #{tpu_custom_call.1} parent=1 // pred_check_branch
      %142 = sbr.rel (0) target = $region45
    $region44: #{tpu_custom_call.1} parent=1 // pred_region
      %143 = dma.done [#allocation9], 128
    $region45: #{tpu_custom_call.1} parent=1 // pred_fallthru
      _
    // Predicated region
    $region46: #{tpu_custom_call.1} parent=1 // pred_check
      _
    $region47: #{tpu_custom_call.1} parent=1 // pred_check_branch
      %145 = sbr.rel (0) target = $region49
    $region48: #{tpu_custom_call.1} parent=1 // pred_region
      %146 = dma.done [#allocation9], 128
    $region49: #{tpu_custom_call.1} parent=1 // pred_fallthru
      _
    // Predicated region
    $region50: #{tpu_custom_call.1} parent=1 // pred_check
      _
    $region51: #{tpu_custom_call.1} parent=1 // pred_check_branch
      %148 = sbr.rel (0) target = $region53
    $region52: #{tpu_custom_call.1} parent=1 // pred_region
      %149 = dma.done [#allocation12], 128
    $region53: #{tpu_custom_call.1} parent=1 // pred_fallthru
      _
    %150 = vsyncpa [#allocation3], 1
    %151 = vsyncpa [#allocation6], 1
    %152 = vsyncpa [#allocation4], 1
    %153 = vsyncpa [#allocation9], 1
    %154 = vsyncpa [#allocation12], 1

</llo_original>
